<compile_context>
chip_gen: v7x
topology: tpu7x:2x2x1
jax: 0.10.0
libtpu: 0.0.40
codegen_flags: <defaults>
</compile_context>

<pallas_src>
import functools

import jax
import jax.numpy as jnp
from jax.experimental import pallas as pl
from jax.experimental.pallas import tpu as pltpu


def se_basic_block_kernel(x_ref, p_ref, o_ref, *, B, C, Cr, HW, use_mxu):
    # x_ref : (B, C, HW) f32 -- NCHW with spatial flattened onto the lane axis
    # p_ref : (C, 4C+4)  f32 -- packed params:
    #           [:, 0:C]     w1' (conv1 weight, bn1 scale folded)
    #           [:, C:2C]    w2' (conv2 weight, bn2 scale folded)
    #           [:, 2C:3C]   fw1 (SE fc1 weight, zero rows >= Cr)
    #           [:, 3C:4C]   fw2 (SE fc2 weight, zero cols >= Cr)
    #           [:, 4C:4C+4] bias columns [b1', b2', fb1(pad), fb2]
    # o_ref : (B, C, HW) f32
    w1 = p_ref[:, 0:C]
    w2 = p_ref[:, C:2 * C]
    fw1 = p_ref[:, 2 * C:3 * C]
    fw2 = p_ref[:, 3 * C:4 * C]
    b1 = p_ref[:, 4 * C:4 * C + 1]
    b2 = p_ref[:, 4 * C + 1:4 * C + 2]
    fb1 = p_ref[:, 4 * C + 2:4 * C + 3]
    fb2 = p_ref[:, 4 * C + 3:4 * C + 4]

    def mm(w, x, n_in):
        # (C_out, >=n_in) x (>=n_in, L) contraction over the first n_in terms.
        if use_mxu:
            # Production path (C >= 64): MXU matmul, bf16 inputs, f32 acc.
            return jnp.dot(w[:, 0:n_in].astype(jnp.bfloat16),
                           x[0:n_in, :].astype(jnp.bfloat16),
                           preferred_element_type=jnp.float32)
        # Tiny-C path: depth-n_in contraction as VPU broadcast-FMAs, pure f32.
        acc = w[:, 0:1] * x[0:1, :]
        for c in range(1, n_in):
            acc = acc + w[:, c:c + 1] * x[c:c + 1, :]
        return acc

    # Fuse the batch onto the lane axis (256-lane-aligned concat) -> (C, B*HW).
    if B > 1:
        x_all = jnp.concatenate([x_ref[b] for b in range(B)], axis=1)
    else:
        x_all = x_ref[0]

    # conv1 (+ folded bn1) + ReLU : one pass over the whole (C, B*HW) slab.
    h = jnp.maximum(mm(w1, x_all, C) + b1, 0.0)
    # conv2 (+ folded bn2) -- no ReLU before SE, matching the PyTorch module.
    h = mm(w2, h, C) + b2                                              # (C, B*HW)

    # SE gate + residual + final ReLU, per lane-dense 256-lane batch slab.
    for b in range(B):
        hb = h[:, b * HW:(b + 1) * HW]                                 # (C, HW)
        y = jnp.mean(hb, axis=1, keepdims=True)                        # (C, 1)
        z = jnp.maximum(mm(fw1, y, C) + fb1, 0.0)                      # (C, 1)
        g = jax.nn.sigmoid(mm(fw2, z, Cr) + fb2)                       # (C, 1)
        o_ref[b] = jnp.maximum(hb * g + x_ref[b], 0.0).astype(o_ref.dtype)


def init_params(key, channels, reduction=1, eps=1e-5):
    cr = channels // reduction
    ks = jax.random.split(key, 16)
    p = {}
    # conv weights stored as (C_out, C_in) (PyTorch (C_out, C_in, 1, 1) squeezed)
    p["w1"] = 0.2 * jax.random.normal(ks[0], (channels, channels), jnp.float32)
    p["b1"] = 0.1 * jax.random.normal(ks[1], (channels,), jnp.float32)
    p["w2"] = 0.2 * jax.random.normal(ks[2], (channels, channels), jnp.float32)
    p["b2"] = 0.1 * jax.random.normal(ks[3], (channels,), jnp.float32)
    # BatchNorm (inference): gamma/beta/running stats -> scale/shift
    for i in (1, 2):
        base = 4 + 4 * (i - 1)
        gamma = 1.0 + 0.1 * jax.random.normal(ks[base], (channels,), jnp.float32)
        beta = 0.1 * jax.random.normal(ks[base + 1], (channels,), jnp.float32)
        mean = 0.1 * jax.random.normal(ks[base + 2], (channels,), jnp.float32)
        var = jnp.abs(1.0 + 0.1 * jax.random.normal(ks[base + 3], (channels,),
                                                    jnp.float32))
        scale = gamma / jnp.sqrt(var + eps)
        p[f"s{i}"] = scale
        p[f"t{i}"] = beta - mean * scale
    # SE fc (two 1x1 convs), stored as (C_out, C_in)
    p["fw1"] = 0.2 * jax.random.normal(ks[12], (cr, channels), jnp.float32)
    p["fb1"] = 0.1 * jax.random.normal(ks[13], (cr,), jnp.float32)
    p["fw2"] = 0.2 * jax.random.normal(ks[14], (channels, cr), jnp.float32)
    p["fb2"] = 0.1 * jax.random.normal(ks[15], (channels,), jnp.float32)
    return p


def se_basic_block(x_nchw, p):
    B, C, H, W = x_nchw.shape
    HW = H * W
    Cr = p["fw1"].shape[0]
    use_mxu = C >= 64  # MXU only pays off at production channel counts

    # NCHW kept; pure reshape (no HBM transpose pass), HW lands on the lane axis.
    x = x_nchw.reshape(B, C, HW).astype(jnp.float32)

    # Fold inference-mode BatchNorm into conv weights / biases.
    w1 = p["s1"][:, None] * p["w1"]                                    # (C, C)
    w2 = p["s2"][:, None] * p["w2"]                                    # (C, C)
    b1 = p["s1"] * p["b1"] + p["t1"]                                   # (C,)
    b2 = p["s2"] * p["b2"] + p["t2"]                                   # (C,)
    fw1_pad = jnp.zeros((C, C), jnp.float32).at[:Cr, :].set(p["fw1"])
    fw2_pad = jnp.zeros((C, C), jnp.float32).at[:, :Cr].set(p["fw2"])
    fb1_pad = jnp.zeros((C,), jnp.float32).at[:Cr].set(p["fb1"])
    bias = jnp.stack([b1, b2, fb1_pad, p["fb2"]], axis=1)              # (C, 4)
    # Single packed param slab -> one DMA / one padded VMEM tile instead of six.
    params = jnp.concatenate([w1, w2, fw1_pad, fw2_pad, bias], axis=1)  # (C,4C+4)

    kernel = functools.partial(se_basic_block_kernel,
                               B=B, C=C, Cr=Cr, HW=HW, use_mxu=use_mxu)

    out = pl.pallas_call(
        kernel,
        out_shape=jax.ShapeDtypeStruct((B, C, HW), jnp.float32),
        grid=(1,),  # whole problem (~8 KiB) in one VMEM block / one grid step
        in_specs=[
            pl.BlockSpec((B, C, HW), lambda i: (0, 0, 0)),
            pl.BlockSpec((C, 4 * C + 4), lambda i: (0, 0)),
        ],
        out_specs=pl.BlockSpec((B, C, HW), lambda i: (0, 0, 0)),
        compiler_params=pltpu.CompilerParams(
            dimension_semantics=("arbitrary",)),
    )(x, params)

    return out.reshape(B, C, H, W)


def se_basic_block_reference(x_nchw, p):
    # Pure-JAX f32 reference (same folded-BN math) for the correctness check.
    B, C, H, W = x_nchw.shape
    x = x_nchw.reshape(B, C, H * W).astype(jnp.float32)
    w1 = p["s1"][:, None] * p["w1"]
    w2 = p["s2"][:, None] * p["w2"]
    b1 = (p["s1"] * p["b1"] + p["t1"])[:, None]
    b2 = (p["s2"] * p["b2"] + p["t2"])[:, None]
    h = jnp.einsum("oc,bcn->bon", w1, x) + b1
    h = jnp.maximum(h, 0.0)
    h = jnp.einsum("oc,bcn->bon", w2, h) + b2
    y = jnp.mean(h, axis=2)                                            # (B, C)
    z = jnp.maximum(y @ p["fw1"].T + p["fb1"], 0.0)                    # (B, Cr)
    g = jax.nn.sigmoid(z @ p["fw2"].T + p["fb2"])                      # (B, C)
    out = jnp.maximum(h * g[:, :, None] + x, 0.0)
    return out.reshape(B, C, H, W)


if __name__ == "__main__":
    key = jax.random.PRNGKey(0)
    kx, kp = jax.random.split(key)

    # SEBasicBlock(inplanes=4, planes=4, stride=1, downsample=None, reduction=1)
    B, C, H, W = 2, 4, 16, 16
    x = jax.random.normal(kx, (B, C, H, W), jnp.float32)
    params = init_params(kp, channels=C, reduction=1)

    out = se_basic_block(x, params)
    jax.block_until_ready(out)

    ref = se_basic_block_reference(x, params)
    assert out.shape == (B, C, H, W)
    assert jnp.allclose(out, ref, atol=1e-4, rtol=1e-4), "mismatch vs reference"
    print("KERNEL_OK")
</pallas_src>

<mosaic_0001>
module attributes {stable_mosaic.version = 11 : i64} {
  func.func @se_basic_block_kernel(%arg0: i32, %arg1: memref<2x4x256xf32, #tpu.memory_space<vmem>>, %arg2: memref<4x20xf32, #tpu.memory_space<vmem>>, %arg3: memref<2x4x256xf32, #tpu.memory_space<vmem>>) attributes {dimension_semantics = [#tpu.dimension_semantics<arbitrary>], iteration_bounds = array<i64: 1>, scalar_prefetch = 0 : i64, scratch_operands = 0 : i64, tpu.core_type = #tpu.core_type<tc>, window_params = [{pipeline_mode = #tpu.pipeline_mode<synchronous>, transform_indices = @transform_0, window_bounds = array<i64: 2, 4, 256>}, {pipeline_mode = #tpu.pipeline_mode<synchronous>, transform_indices = @transform_1, window_bounds = array<i64: 4, 20>}, {pipeline_mode = #tpu.pipeline_mode<synchronous>, transform_indices = @transform_2, window_bounds = array<i64: 2, 4, 256>}]} {
    %c0 = arith.constant 0 : index
    %c0_0 = arith.constant 0 : index
    %0 = vector.load %arg2[%c0, %c0_0] : memref<4x20xf32, #tpu.memory_space<vmem>>, vector<4x4xf32>
    %c0_1 = arith.constant 0 : index
    %c4 = arith.constant 4 : index
    %1 = vector.load %arg2[%c0_1, %c4] : memref<4x20xf32, #tpu.memory_space<vmem>>, vector<4x4xf32>
    %c0_2 = arith.constant 0 : index
    %c8 = arith.constant 8 : index
    %2 = vector.load %arg2[%c0_2, %c8] : memref<4x20xf32, #tpu.memory_space<vmem>>, vector<4x4xf32>
    %c0_3 = arith.constant 0 : index
    %c12 = arith.constant 12 : index
    %3 = vector.load %arg2[%c0_3, %c12] : memref<4x20xf32, #tpu.memory_space<vmem>>, vector<4x4xf32>
    %c0_4 = arith.constant 0 : index
    %c16 = arith.constant 16 : index
    %4 = vector.load %arg2[%c0_4, %c16] : memref<4x20xf32, #tpu.memory_space<vmem>>, vector<4x1xf32>
    %c0_5 = arith.constant 0 : index
    %c17 = arith.constant 17 : index
    %5 = vector.load %arg2[%c0_5, %c17] : memref<4x20xf32, #tpu.memory_space<vmem>>, vector<4x1xf32>
    %c0_6 = arith.constant 0 : index
    %c18 = arith.constant 18 : index
    %6 = vector.load %arg2[%c0_6, %c18] : memref<4x20xf32, #tpu.memory_space<vmem>>, vector<4x1xf32>
    %c0_7 = arith.constant 0 : index
    %c19 = arith.constant 19 : index
    %7 = vector.load %arg2[%c0_7, %c19] : memref<4x20xf32, #tpu.memory_space<vmem>>, vector<4x1xf32>
    %c0_8 = arith.constant 0 : index
    %c0_9 = arith.constant 0 : index
    %c0_10 = arith.constant 0 : index
    %8 = vector.load %arg1[%c0_8, %c0_9, %c0_10] : memref<2x4x256xf32, #tpu.memory_space<vmem>>, vector<1x4x256xf32>
    %9 = vector.shape_cast %8 : vector<1x4x256xf32> to vector<4x256xf32>
    %c1 = arith.constant 1 : index
    %c0_11 = arith.constant 0 : index
    %c0_12 = arith.constant 0 : index
    %10 = vector.load %arg1[%c1, %c0_11, %c0_12] : memref<2x4x256xf32, #tpu.memory_space<vmem>>, vector<1x4x256xf32>
    %11 = vector.shape_cast %10 : vector<1x4x256xf32> to vector<4x256xf32>
    %12 = tpu.concatenate %9, %11 in 1 : vector<4x256xf32>, vector<4x256xf32> -> vector<4x512xf32>
    %13 = vector.extract_strided_slice %0 {offsets = [0, 0], sizes = [4, 1], strides = [1, 1]} : vector<4x4xf32> to vector<4x1xf32>
    %14 = vector.extract_strided_slice %12 {offsets = [0, 0], sizes = [1, 512], strides = [1, 1]} : vector<4x512xf32> to vector<1x512xf32>
    %15 = vector.broadcast %13 : vector<4x1xf32> to vector<4x512xf32>
    %16 = vector.broadcast %14 : vector<1x512xf32> to vector<4x512xf32>
    %17 = arith.mulf %15, %16 : vector<4x512xf32>
    %18 = vector.extract_strided_slice %0 {offsets = [0, 1], sizes = [4, 1], strides = [1, 1]} : vector<4x4xf32> to vector<4x1xf32>
    %19 = vector.extract_strided_slice %12 {offsets = [1, 0], sizes = [1, 512], strides = [1, 1]} : vector<4x512xf32> to vector<1x512xf32>
    %20 = vector.broadcast %18 : vector<4x1xf32> to vector<4x512xf32>
    %21 = vector.broadcast %19 : vector<1x512xf32> to vector<4x512xf32>
    %22 = arith.mulf %20, %21 : vector<4x512xf32>
    %23 = arith.addf %17, %22 : vector<4x512xf32>
    %24 = vector.extract_strided_slice %0 {offsets = [0, 2], sizes = [4, 1], strides = [1, 1]} : vector<4x4xf32> to vector<4x1xf32>
    %25 = vector.extract_strided_slice %12 {offsets = [2, 0], sizes = [1, 512], strides = [1, 1]} : vector<4x512xf32> to vector<1x512xf32>
    %26 = vector.broadcast %24 : vector<4x1xf32> to vector<4x512xf32>
    %27 = vector.broadcast %25 : vector<1x512xf32> to vector<4x512xf32>
    %28 = arith.mulf %26, %27 : vector<4x512xf32>
    %29 = arith.addf %23, %28 : vector<4x512xf32>
    %30 = vector.extract_strided_slice %0 {offsets = [0, 3], sizes = [4, 1], strides = [1, 1]} : vector<4x4xf32> to vector<4x1xf32>
    %31 = vector.extract_strided_slice %12 {offsets = [3, 0], sizes = [1, 512], strides = [1, 1]} : vector<4x512xf32> to vector<1x512xf32>
    %32 = vector.broadcast %30 : vector<4x1xf32> to vector<4x512xf32>
    %33 = vector.broadcast %31 : vector<1x512xf32> to vector<4x512xf32>
    %34 = arith.mulf %32, %33 : vector<4x512xf32>
    %35 = arith.addf %29, %34 : vector<4x512xf32>
    %36 = vector.broadcast %4 : vector<4x1xf32> to vector<4x512xf32>
    %37 = arith.addf %35, %36 : vector<4x512xf32>
    %cst = arith.constant 0.000000e+00 : f32
    %38 = vector.broadcast %cst : f32 to vector<4x512xf32>
    %39 = arith.maximumf %37, %38 : vector<4x512xf32>
    %40 = vector.extract_strided_slice %1 {offsets = [0, 0], sizes = [4, 1], strides = [1, 1]} : vector<4x4xf32> to vector<4x1xf32>
    %41 = vector.extract_strided_slice %39 {offsets = [0, 0], sizes = [1, 512], strides = [1, 1]} : vector<4x512xf32> to vector<1x512xf32>
    %42 = vector.broadcast %40 : vector<4x1xf32> to vector<4x512xf32>
    %43 = vector.broadcast %41 : vector<1x512xf32> to vector<4x512xf32>
    %44 = arith.mulf %42, %43 : vector<4x512xf32>
    %45 = vector.extract_strided_slice %1 {offsets = [0, 1], sizes = [4, 1], strides = [1, 1]} : vector<4x4xf32> to vector<4x1xf32>
    %46 = vector.extract_strided_slice %39 {offsets = [1, 0], sizes = [1, 512], strides = [1, 1]} : vector<4x512xf32> to vector<1x512xf32>
    %47 = vector.broadcast %45 : vector<4x1xf32> to vector<4x512xf32>
    %48 = vector.broadcast %46 : vector<1x512xf32> to vector<4x512xf32>
    %49 = arith.mulf %47, %48 : vector<4x512xf32>
    %50 = arith.addf %44, %49 : vector<4x512xf32>
    %51 = vector.extract_strided_slice %1 {offsets = [0, 2], sizes = [4, 1], strides = [1, 1]} : vector<4x4xf32> to vector<4x1xf32>
    %52 = vector.extract_strided_slice %39 {offsets = [2, 0], sizes = [1, 512], strides = [1, 1]} : vector<4x512xf32> to vector<1x512xf32>
    %53 = vector.broadcast %51 : vector<4x1xf32> to vector<4x512xf32>
    %54 = vector.broadcast %52 : vector<1x512xf32> to vector<4x512xf32>
    %55 = arith.mulf %53, %54 : vector<4x512xf32>
    %56 = arith.addf %50, %55 : vector<4x512xf32>
    %57 = vector.extract_strided_slice %1 {offsets = [0, 3], sizes = [4, 1], strides = [1, 1]} : vector<4x4xf32> to vector<4x1xf32>
    %58 = vector.extract_strided_slice %39 {offsets = [3, 0], sizes = [1, 512], strides = [1, 1]} : vector<4x512xf32> to vector<1x512xf32>
    %59 = vector.broadcast %57 : vector<4x1xf32> to vector<4x512xf32>
    %60 = vector.broadcast %58 : vector<1x512xf32> to vector<4x512xf32>
    %61 = arith.mulf %59, %60 : vector<4x512xf32>
    %62 = arith.addf %56, %61 : vector<4x512xf32>
    %63 = vector.broadcast %5 : vector<4x1xf32> to vector<4x512xf32>
    %64 = arith.addf %62, %63 : vector<4x512xf32>
    %65 = vector.extract_strided_slice %64 {offsets = [0, 0], sizes = [4, 256], strides = [1, 1]} : vector<4x512xf32> to vector<4x256xf32>
    %cst_13 = arith.constant dense<0.000000e+00> : vector<4xf32>
    %66 = vector.multi_reduction <add>, %65, %cst_13 [1] : vector<4x256xf32> to vector<4xf32>
    %67 = vector.shape_cast %66 : vector<4xf32> to vector<4x1xf32>
    %cst_14 = arith.constant 2.560000e+02 : f32
    %68 = vector.broadcast %cst_14 : f32 to vector<4x1xf32>
    %69 = arith.divf %67, %68 : vector<4x1xf32>
    %70 = vector.extract_strided_slice %2 {offsets = [0, 0], sizes = [4, 1], strides = [1, 1]} : vector<4x4xf32> to vector<4x1xf32>
    %71 = vector.extract_strided_slice %69 {offsets = [0, 0], sizes = [1, 1], strides = [1, 1]} : vector<4x1xf32> to vector<1x1xf32>
    %72 = vector.broadcast %71 : vector<1x1xf32> to vector<4x1xf32>
    %73 = arith.mulf %70, %72 : vector<4x1xf32>
    %74 = vector.extract_strided_slice %2 {offsets = [0, 1], sizes = [4, 1], strides = [1, 1]} : vector<4x4xf32> to vector<4x1xf32>
    %75 = vector.extract_strided_slice %69 {offsets = [1, 0], sizes = [1, 1], strides = [1, 1]} : vector<4x1xf32> to vector<1x1xf32>
    %76 = vector.broadcast %75 : vector<1x1xf32> to vector<4x1xf32>
    %77 = arith.mulf %74, %76 : vector<4x1xf32>
    %78 = arith.addf %73, %77 : vector<4x1xf32>
    %79 = vector.extract_strided_slice %2 {offsets = [0, 2], sizes = [4, 1], strides = [1, 1]} : vector<4x4xf32> to vector<4x1xf32>
    %80 = vector.extract_strided_slice %69 {offsets = [2, 0], sizes = [1, 1], strides = [1, 1]} : vector<4x1xf32> to vector<1x1xf32>
    %81 = vector.broadcast %80 : vector<1x1xf32> to vector<4x1xf32>
    %82 = arith.mulf %79, %81 : vector<4x1xf32>
    %83 = arith.addf %78, %82 : vector<4x1xf32>
    %84 = vector.extract_strided_slice %2 {offsets = [0, 3], sizes = [4, 1], strides = [1, 1]} : vector<4x4xf32> to vector<4x1xf32>
    %85 = vector.extract_strided_slice %69 {offsets = [3, 0], sizes = [1, 1], strides = [1, 1]} : vector<4x1xf32> to vector<1x1xf32>
    %86 = vector.broadcast %85 : vector<1x1xf32> to vector<4x1xf32>
    %87 = arith.mulf %84, %86 : vector<4x1xf32>
    %88 = arith.addf %83, %87 : vector<4x1xf32>
    %89 = arith.addf %88, %6 : vector<4x1xf32>
    %cst_15 = arith.constant 0.000000e+00 : f32
    %90 = vector.broadcast %cst_15 : f32 to vector<4x1xf32>
    %91 = arith.maximumf %89, %90 : vector<4x1xf32>
    %92 = vector.extract_strided_slice %3 {offsets = [0, 0], sizes = [4, 1], strides = [1, 1]} : vector<4x4xf32> to vector<4x1xf32>
    %93 = vector.extract_strided_slice %91 {offsets = [0, 0], sizes = [1, 1], strides = [1, 1]} : vector<4x1xf32> to vector<1x1xf32>
    %94 = vector.broadcast %93 : vector<1x1xf32> to vector<4x1xf32>
    %95 = arith.mulf %92, %94 : vector<4x1xf32>
    %96 = vector.extract_strided_slice %3 {offsets = [0, 1], sizes = [4, 1], strides = [1, 1]} : vector<4x4xf32> to vector<4x1xf32>
    %97 = vector.extract_strided_slice %91 {offsets = [1, 0], sizes = [1, 1], strides = [1, 1]} : vector<4x1xf32> to vector<1x1xf32>
    %98 = vector.broadcast %97 : vector<1x1xf32> to vector<4x1xf32>
    %99 = arith.mulf %96, %98 : vector<4x1xf32>
    %100 = arith.addf %95, %99 : vector<4x1xf32>
    %101 = vector.extract_strided_slice %3 {offsets = [0, 2], sizes = [4, 1], strides = [1, 1]} : vector<4x4xf32> to vector<4x1xf32>
    %102 = vector.extract_strided_slice %91 {offsets = [2, 0], sizes = [1, 1], strides = [1, 1]} : vector<4x1xf32> to vector<1x1xf32>
    %103 = vector.broadcast %102 : vector<1x1xf32> to vector<4x1xf32>
    %104 = arith.mulf %101, %103 : vector<4x1xf32>
    %105 = arith.addf %100, %104 : vector<4x1xf32>
    %106 = vector.extract_strided_slice %3 {offsets = [0, 3], sizes = [4, 1], strides = [1, 1]} : vector<4x4xf32> to vector<4x1xf32>
    %107 = vector.extract_strided_slice %91 {offsets = [3, 0], sizes = [1, 1], strides = [1, 1]} : vector<4x1xf32> to vector<1x1xf32>
    %108 = vector.broadcast %107 : vector<1x1xf32> to vector<4x1xf32>
    %109 = arith.mulf %106, %108 : vector<4x1xf32>
    %110 = arith.addf %105, %109 : vector<4x1xf32>
    %111 = arith.addf %110, %7 : vector<4x1xf32>
    %112 = arith.negf %111 : vector<4x1xf32>
    %113 = math.exp %112 : vector<4x1xf32>
    %cst_16 = arith.constant 1.000000e+00 : f32
    %114 = vector.broadcast %cst_16 : f32 to vector<4x1xf32>
    %115 = arith.addf %114, %113 : vector<4x1xf32>
    %116 = arith.divf %114, %115 : vector<4x1xf32>
    %117 = vector.broadcast %116 : vector<4x1xf32> to vector<4x256xf32>
    %118 = arith.mulf %65, %117 : vector<4x256xf32>
    %c0_17 = arith.constant 0 : index
    %c0_18 = arith.constant 0 : index
    %c0_19 = arith.constant 0 : index
    %119 = vector.load %arg1[%c0_17, %c0_18, %c0_19] : memref<2x4x256xf32, #tpu.memory_space<vmem>>, vector<1x4x256xf32>
    %120 = vector.shape_cast %119 : vector<1x4x256xf32> to vector<4x256xf32>
    %121 = arith.addf %118, %120 : vector<4x256xf32>
    %cst_20 = arith.constant 0.000000e+00 : f32
    %122 = vector.broadcast %cst_20 : f32 to vector<4x256xf32>
    %123 = arith.maximumf %121, %122 : vector<4x256xf32>
    %c0_21 = arith.constant 0 : index
    %c0_22 = arith.constant 0 : index
    %c0_23 = arith.constant 0 : index
    %124 = vector.load %arg3[%c0_21, %c0_22, %c0_23] : memref<2x4x256xf32, #tpu.memory_space<vmem>>, vector<1x4x256xf32>
    %125 = vector.shape_cast %124 : vector<1x4x256xf32> to vector<4x256xf32>
    %126 = vector.shape_cast %123 : vector<4x256xf32> to vector<1x4x256xf32>
    tpu.vector_store %arg3[%c0_21, %c0_22, %c0_23], %126 {strides = array<i32>} : memref<2x4x256xf32, #tpu.memory_space<vmem>>, vector<1x4x256xf32>,
    %127 = vector.extract_strided_slice %64 {offsets = [0, 256], sizes = [4, 256], strides = [1, 1]} : vector<4x512xf32> to vector<4x256xf32>
    %cst_24 = arith.constant dense<0.000000e+00> : vector<4xf32>
    %128 = vector.multi_reduction <add>, %127, %cst_24 [1] : vector<4x256xf32> to vector<4xf32>
    %129 = vector.shape_cast %128 : vector<4xf32> to vector<4x1xf32>
    %cst_25 = arith.constant 2.560000e+02 : f32
    %130 = vector.broadcast %cst_25 : f32 to vector<4x1xf32>
    %131 = arith.divf %129, %130 : vector<4x1xf32>
    %132 = vector.extract_strided_slice %2 {offsets = [0, 0], sizes = [4, 1], strides = [1, 1]} : vector<4x4xf32> to vector<4x1xf32>
    %133 = vector.extract_strided_slice %131 {offsets = [0, 0], sizes = [1, 1], strides = [1, 1]} : vector<4x1xf32> to vector<1x1xf32>
    %134 = vector.broadcast %133 : vector<1x1xf32> to vector<4x1xf32>
    %135 = arith.mulf %132, %134 : vector<4x1xf32>
    %136 = vector.extract_strided_slice %2 {offsets = [0, 1], sizes = [4, 1], strides = [1, 1]} : vector<4x4xf32> to vector<4x1xf32>
    %137 = vector.extract_strided_slice %131 {offsets = [1, 0], sizes = [1, 1], strides = [1, 1]} : vector<4x1xf32> to vector<1x1xf32>
    %138 = vector.broadcast %137 : vector<1x1xf32> to vector<4x1xf32>
    %139 = arith.mulf %136, %138 : vector<4x1xf32>
    %140 = arith.addf %135, %139 : vector<4x1xf32>
    %141 = vector.extract_strided_slice %2 {offsets = [0, 2], sizes = [4, 1], strides = [1, 1]} : vector<4x4xf32> to vector<4x1xf32>
    %142 = vector.extract_strided_slice %131 {offsets = [2, 0], sizes = [1, 1], strides = [1, 1]} : vector<4x1xf32> to vector<1x1xf32>
    %143 = vector.broadcast %142 : vector<1x1xf32> to vector<4x1xf32>
    %144 = arith.mulf %141, %143 : vector<4x1xf32>
    %145 = arith.addf %140, %144 : vector<4x1xf32>
    %146 = vector.extract_strided_slice %2 {offsets = [0, 3], sizes = [4, 1], strides = [1, 1]} : vector<4x4xf32> to vector<4x1xf32>
    %147 = vector.extract_strided_slice %131 {offsets = [3, 0], sizes = [1, 1], strides = [1, 1]} : vector<4x1xf32> to vector<1x1xf32>
    %148 = vector.broadcast %147 : vector<1x1xf32> to vector<4x1xf32>
    %149 = arith.mulf %146, %148 : vector<4x1xf32>
    %150 = arith.addf %145, %149 : vector<4x1xf32>
    %151 = arith.addf %150, %6 : vector<4x1xf32>
    %cst_26 = arith.constant 0.000000e+00 : f32
    %152 = vector.broadcast %cst_26 : f32 to vector<4x1xf32>
    %153 = arith.maximumf %151, %152 : vector<4x1xf32>
    %154 = vector.extract_strided_slice %3 {offsets = [0, 0], sizes = [4, 1], strides = [1, 1]} : vector<4x4xf32> to vector<4x1xf32>
    %155 = vector.extract_strided_slice %153 {offsets = [0, 0], sizes = [1, 1], strides = [1, 1]} : vector<4x1xf32> to vector<1x1xf32>
    %156 = vector.broadcast %155 : vector<1x1xf32> to vector<4x1xf32>
    %157 = arith.mulf %154, %156 : vector<4x1xf32>
    %158 = vector.extract_strided_slice %3 {offsets = [0, 1], sizes = [4, 1], strides = [1, 1]} : vector<4x4xf32> to vector<4x1xf32>
    %159 = vector.extract_strided_slice %153 {offsets = [1, 0], sizes = [1, 1], strides = [1, 1]} : vector<4x1xf32> to vector<1x1xf32>
    %160 = vector.broadcast %159 : vector<1x1xf32> to vector<4x1xf32>
    %161 = arith.mulf %158, %160 : vector<4x1xf32>
    %162 = arith.addf %157, %161 : vector<4x1xf32>
    %163 = vector.extract_strided_slice %3 {offsets = [0, 2], sizes = [4, 1], strides = [1, 1]} : vector<4x4xf32> to vector<4x1xf32>
    %164 = vector.extract_strided_slice %153 {offsets = [2, 0], sizes = [1, 1], strides = [1, 1]} : vector<4x1xf32> to vector<1x1xf32>
    %165 = vector.broadcast %164 : vector<1x1xf32> to vector<4x1xf32>
    %166 = arith.mulf %163, %165 : vector<4x1xf32>
    %167 = arith.addf %162, %166 : vector<4x1xf32>
    %168 = vector.extract_strided_slice %3 {offsets = [0, 3], sizes = [4, 1], strides = [1, 1]} : vector<4x4xf32> to vector<4x1xf32>
    %169 = vector.extract_strided_slice %153 {offsets = [3, 0], sizes = [1, 1], strides = [1, 1]} : vector<4x1xf32> to vector<1x1xf32>
    %170 = vector.broadcast %169 : vector<1x1xf32> to vector<4x1xf32>
    %171 = arith.mulf %168, %170 : vector<4x1xf32>
    %172 = arith.addf %167, %171 : vector<4x1xf32>
    %173 = arith.addf %172, %7 : vector<4x1xf32>
    %174 = arith.negf %173 : vector<4x1xf32>
    %175 = math.exp %174 : vector<4x1xf32>
    %cst_27 = arith.constant 1.000000e+00 : f32
    %176 = vector.broadcast %cst_27 : f32 to vector<4x1xf32>
    %177 = arith.addf %176, %175 : vector<4x1xf32>
    %178 = arith.divf %176, %177 : vector<4x1xf32>
    %179 = vector.broadcast %178 : vector<4x1xf32> to vector<4x256xf32>
    %180 = arith.mulf %127, %179 : vector<4x256xf32>
    %c1_28 = arith.constant 1 : index
    %c0_29 = arith.constant 0 : index
    %c0_30 = arith.constant 0 : index
    %181 = vector.load %arg1[%c1_28, %c0_29, %c0_30] : memref<2x4x256xf32, #tpu.memory_space<vmem>>, vector<1x4x256xf32>
    %182 = vector.shape_cast %181 : vector<1x4x256xf32> to vector<4x256xf32>
    %183 = arith.addf %180, %182 : vector<4x256xf32>
    %cst_31 = arith.constant 0.000000e+00 : f32
    %184 = vector.broadcast %cst_31 : f32 to vector<4x256xf32>
    %185 = arith.maximumf %183, %184 : vector<4x256xf32>
    %c1_32 = arith.constant 1 : index
    %c0_33 = arith.constant 0 : index
    %c0_34 = arith.constant 0 : index
    %186 = vector.load %arg3[%c1_32, %c0_33, %c0_34] : memref<2x4x256xf32, #tpu.memory_space<vmem>>, vector<1x4x256xf32>
    %187 = vector.shape_cast %186 : vector<1x4x256xf32> to vector<4x256xf32>
    %188 = vector.shape_cast %185 : vector<4x256xf32> to vector<1x4x256xf32>
    tpu.vector_store %arg3[%c1_32, %c0_33, %c0_34], %188 {strides = array<i32>} : memref<2x4x256xf32, #tpu.memory_space<vmem>>, vector<1x4x256xf32>,
    return
  }
  func.func @transform_0(%arg0: i32) -> (i32, i32, i32) {
    %c0_i32 = arith.constant 0 : i32
    %c0_i32_0 = arith.constant 0 : i32
    %c0_i32_1 = arith.constant 0 : i32
    %c0_i32_2 = arith.constant 0 : i32
    return %c0_i32, %c0_i32_0, %c0_i32_1 : i32, i32, i32
  }
  func.func @transform_1(%arg0: i32) -> (i32, i32) {
    %c0_i32 = arith.constant 0 : i32
    %c0_i32_0 = arith.constant 0 : i32
    %c0_i32_1 = arith.constant 0 : i32
    return %c0_i32, %c0_i32_0 : i32, i32
  }
  func.func @transform_2(%arg0: i32) -> (i32, i32, i32) {
    %c0_i32 = arith.constant 0 : i32
    %c0_i32_0 = arith.constant 0 : i32
    %c0_i32_1 = arith.constant 0 : i32
    %c0_i32_2 = arith.constant 0 : i32
    return %c0_i32, %c0_i32_0, %c0_i32_1 : i32, i32, i32
  }
}

</mosaic_0001>

<llo_original>
// kernel: tpu_custom_call.1
$region0: #{tpu_custom_call.1}
  #allocation0 [shape = 'u32[]', space=smem, size = 0x4, offset = 0x4, fixed_abs, tag = 'smem constant byte address 0x4 - core index']
  #allocation1 [shape = 'u32[144,128]{1,0:T(1,128)}', space=vmem, size = 0x12000, scoped, tag = 'internal scratch']
  %s0 = inlined_call_operand.hbm [shape: f32[2,4,256], index: 0, kind: input, shape index: {}]
  %s1 = inlined_call_operand.hbm [shape: f32[4,20], index: 1, kind: input, shape index: {}]
  %s2 = inlined_call_operand.hbm [shape: f32[2,4,256], index: 2, kind: output, shape index: {}]
  %s3 = sld [smem:[#allocation0]]
  $region26: #{tpu_custom_call.1} parent=0
    _
  %s5 = ssub.s32 1, %s3
  %s6 = scalar_select 0, %s5, %s3
  $region1: #{tpu_custom_call.1} parent=0
    #allocation2 [shape = 'u8[8192]{0}', space=vmem, size = 0x2000, scoped, tag = 'input window, operand 0, single buffered']
    #allocation3 [shape = 's32[1]{0}', space=sflag, size = 0x4, scoped, tag = 'scoped memory for tpu_custom_call.1']
    #allocation4 [shape = 's32[1]{0}', space=sflag, size = 0x4, scoped, tag = 'scoped memory for tpu_custom_call.1']
    #allocation5 [shape = 'u8[2048]{0}', space=vmem, size = 0x800, scoped, tag = 'input window, operand 1, single buffered']
    #allocation6 [shape = 's32[1]{0}', space=sflag, size = 0x4, scoped, tag = 'scoped memory for tpu_custom_call.1']
    #allocation7 [shape = 'u8[8192]{0}', space=vmem, size = 0x2000, scoped, tag = 'output window, operand 0, single buffered']
    %7 = vsyncpa [#allocation3], 0
    %8 = vsyncpa [#allocation6], 0
    %9 = vsyncpa [#allocation4], 0
    // Predicated region
    $region2: #{tpu_custom_call.1} parent=1 // pred_check
      _
    $region3: #{tpu_custom_call.1} parent=1 // pred_check_branch
      %11 = sbr.rel (0) target = $region5
    $region4: #{tpu_custom_call.1} parent=1 // pred_region
      %s13 = ssub.s32 256, 256
      %14 = vsyncadd [#allocation3], %s13
      %s15 = sshll.u32 [#allocation2], 4
      %s16 = int_to_ptr.vmem [resolvable:$true] %s15
      %21 = dma.hbm_to_vmem [thread:$0]  %s0, 256, %s16, [#allocation3], 128, 128, 8
    $region5: #{tpu_custom_call.1} parent=1 // pred_fallthru
      _
    // Predicated region
    $region6: #{tpu_custom_call.1} parent=1 // pred_check
      _
    $region7: #{tpu_custom_call.1} parent=1 // pred_check_branch
      %23 = sbr.rel (0) target = $region9
    $region8: #{tpu_custom_call.1} parent=1 // pred_region
      %s25 = ssub.s32 64, 64
      %26 = vsyncadd [#allocation6], %s25
      %s28 = sshll.u32 [#allocation5], 4
      %s29 = int_to_ptr.vmem [resolvable:$true] %s28
      %31 = dma.hbm_to_vmem [thread:$0]  %s1, 64, %s29, [#allocation6]
    $region9: #{tpu_custom_call.1} parent=1 // pred_fallthru
      _
    // Predicated region
    $region10: #{tpu_custom_call.1} parent=1 // pred_check
      _
    $region11: #{tpu_custom_call.1} parent=1 // pred_check_branch
      %33 = sbr.rel (0) target = $region13
    $region12: #{tpu_custom_call.1} parent=1 // pred_region
      %34 = dma.done [#allocation3], 256
    $region13: #{tpu_custom_call.1} parent=1 // pred_fallthru
      _
    // Predicated region
    $region14: #{tpu_custom_call.1} parent=1 // pred_check
      _
    $region15: #{tpu_custom_call.1} parent=1 // pred_check_branch
      %36 = sbr.rel (0) target = $region17
    $region16: #{tpu_custom_call.1} parent=1 // pred_region
      %37 = dma.done [#allocation6], 64
    $region17: #{tpu_custom_call.1} parent=1 // pred_fallthru
      _
    %v38 = vld [vmem:[#allocation5] sm:$0xf]
    %v39 = vld [vmem:[#allocation2] sm:$0xff]
    %s40 = scalar_lea.vmem [#allocation2], 8
    %v41 = vld [vmem:[%s40] sm:$0xff]
    %v43 = vcombine.high %v39, %v39
    %v46 = vcombine.high %v41, %v41
    %49 = vset.pattern.permute.xlu0 0
    %50 = vperm.xlu0 %49, %v38
    %v51 = vpop.permute.xlu0 %50
    %v53 = vlaneseq
    %v54 = vshrl.u32 %v53, 7
    %v55 = vsub.s32 0, %v54
    %v56 = vrot.slane %v39, %v55
    %v57 = vlaneseq
    %v58 = vshrl.u32 %v57, 7
    %v59 = vsub.s32 0, %v58
    %v60 = vrot.slane %v43, %v59
    %v61 = vlaneseq
    %v62 = vshrl.u32 %v61, 7
    %v63 = vsub.s32 0, %v62
    %v64 = vrot.slane %v41, %v63
    %v65 = vlaneseq
    %v66 = vshrl.u32 %v65, 7
    %v67 = vsub.s32 0, %v66
    %v68 = vrot.slane %v46, %v67
    %v69 = vmul.f32 %v51, %v56
    %v70 = vmul.f32 %v51, %v60
    %v71 = vmul.f32 %v51, %v64
    %v72 = vmul.f32 %v51, %v68
    %73 = vset.pattern.permute.xlu0 1
    %74 = vperm.xlu0 %73, %v38
    %v75 = vpop.permute.xlu0 %74
    %v77 = vlaneseq
    %v78 = vshrl.u32 %v77, 7
    %v79 = vsub.s32 1, %v78
    %v80 = vrot.slane %v39, %v79
    %v81 = vlaneseq
    %v82 = vshrl.u32 %v81, 7
    %v83 = vsub.s32 1, %v82
    %v84 = vrot.slane %v43, %v83
    %v85 = vlaneseq
    %v86 = vshrl.u32 %v85, 7
    %v87 = vsub.s32 1, %v86
    %v88 = vrot.slane %v41, %v87
    %v89 = vlaneseq
    %v90 = vshrl.u32 %v89, 7
    %v91 = vsub.s32 1, %v90
    %v92 = vrot.slane %v46, %v91
    %v93 = vmul.f32 %v75, %v80
    %v94 = vmul.f32 %v75, %v84
    %v95 = vmul.f32 %v75, %v88
    %v96 = vmul.f32 %v75, %v92
    %v97 = vadd.f32 %v69, %v93
    %v98 = vadd.f32 %v70, %v94
    %v99 = vadd.f32 %v71, %v95
    %v100 = vadd.f32 %v72, %v96
    %101 = vset.pattern.permute.xlu0 2
    %102 = vperm.xlu0 %101, %v38
    %v103 = vpop.permute.xlu0 %102
    %v105 = vlaneseq
    %v106 = vshrl.u32 %v105, 7
    %v107 = vsub.s32 2, %v106
    %v108 = vrot.slane %v39, %v107
    %v109 = vlaneseq
    %v110 = vshrl.u32 %v109, 7
    %v111 = vsub.s32 2, %v110
    %v112 = vrot.slane %v43, %v111
    %v113 = vlaneseq
    %v114 = vshrl.u32 %v113, 7
    %v115 = vsub.s32 2, %v114
    %v116 = vrot.slane %v41, %v115
    %v117 = vlaneseq
    %v118 = vshrl.u32 %v117, 7
    %v119 = vsub.s32 2, %v118
    %v120 = vrot.slane %v46, %v119
    %v121 = vmul.f32 %v103, %v108
    %v122 = vmul.f32 %v103, %v112
    %v123 = vmul.f32 %v103, %v116
    %v124 = vmul.f32 %v103, %v120
    %v125 = vadd.f32 %v97, %v121
    %v126 = vadd.f32 %v98, %v122
    %v127 = vadd.f32 %v99, %v123
    %v128 = vadd.f32 %v100, %v124
    %129 = vset.pattern.permute.xlu0 3
    %130 = vperm.xlu0 %129, %v38
    %v131 = vpop.permute.xlu0 %130
    %v133 = vlaneseq
    %v134 = vshrl.u32 %v133, 7
    %v135 = vsub.s32 3, %v134
    %v136 = vrot.slane %v39, %v135
    %v137 = vlaneseq
    %v138 = vshrl.u32 %v137, 7
    %v139 = vsub.s32 3, %v138
    %v140 = vrot.slane %v43, %v139
    %v141 = vlaneseq
    %v142 = vshrl.u32 %v141, 7
    %v143 = vsub.s32 3, %v142
    %v144 = vrot.slane %v41, %v143
    %v145 = vlaneseq
    %v146 = vshrl.u32 %v145, 7
    %v147 = vsub.s32 3, %v146
    %v148 = vrot.slane %v46, %v147
    %v149 = vmul.f32 %v131, %v136
    %v150 = vmul.f32 %v131, %v140
    %v151 = vmul.f32 %v131, %v144
    %v152 = vmul.f32 %v131, %v148
    %v153 = vadd.f32 %v125, %v149
    %v154 = vadd.f32 %v126, %v150
    %v155 = vadd.f32 %v127, %v151
    %v156 = vadd.f32 %v128, %v152
    %157 = vset.pattern.permute.xlu0 16
    %158 = vperm.xlu0 %157, %v38
    %v159 = vpop.permute.xlu0 %158
    %v161 = vadd.f32 %v153, %v159
    %v162 = vadd.f32 %v154, %v159
    %v163 = vadd.f32 %v155, %v159
    %v164 = vadd.f32 %v156, %v159
    %v165 = vmax.f32 %v161, 0.0
    %v166 = vmax.f32 %v162, 0.0
    %v167 = vmax.f32 %v163, 0.0
    %v168 = vmax.f32 %v164, 0.0
    %169 = vset.pattern.permute.xlu0 4
    %170 = vperm.xlu0 %169, %v38
    %v171 = vpop.permute.xlu0 %170
    %v173 = vlaneseq
    %v174 = vshrl.u32 %v173, 7
    %v175 = vsub.s32 0, %v174
    %v176 = vrot.slane %v165, %v175
    %v177 = vlaneseq
    %v178 = vshrl.u32 %v177, 7
    %v179 = vsub.s32 0, %v178
    %v180 = vrot.slane %v166, %v179
    %v181 = vlaneseq
    %v182 = vshrl.u32 %v181, 7
    %v183 = vsub.s32 0, %v182
    %v184 = vrot.slane %v167, %v183
    %v185 = vlaneseq
    %v186 = vshrl.u32 %v185, 7
    %v187 = vsub.s32 0, %v186
    %v188 = vrot.slane %v168, %v187
    %v189 = vmul.f32 %v171, %v176
    %v190 = vmul.f32 %v171, %v180
    %v191 = vmul.f32 %v171, %v184
    %v192 = vmul.f32 %v171, %v188
    %193 = vset.pattern.permute.xlu0 5
    %194 = vperm.xlu0 %193, %v38
    %v195 = vpop.permute.xlu0 %194
    %v197 = vlaneseq
    %v198 = vshrl.u32 %v197, 7
    %v199 = vsub.s32 1, %v198
    %v200 = vrot.slane %v165, %v199
    %v201 = vlaneseq
    %v202 = vshrl.u32 %v201, 7
    %v203 = vsub.s32 1, %v202
    %v204 = vrot.slane %v166, %v203
    %v205 = vlaneseq
    %v206 = vshrl.u32 %v205, 7
    %v207 = vsub.s32 1, %v206
    %v208 = vrot.slane %v167, %v207
    %v209 = vlaneseq
    %v210 = vshrl.u32 %v209, 7
    %v211 = vsub.s32 1, %v210
    %v212 = vrot.slane %v168, %v211
    %v213 = vmul.f32 %v195, %v200
    %v214 = vmul.f32 %v195, %v204
    %v215 = vmul.f32 %v195, %v208
    %v216 = vmul.f32 %v195, %v212
    %v217 = vadd.f32 %v189, %v213
    %v218 = vadd.f32 %v190, %v214
    %v219 = vadd.f32 %v191, %v215
    %v220 = vadd.f32 %v192, %v216
    %221 = vset.pattern.permute.xlu0 6
    %222 = vperm.xlu0 %221, %v38
    %v223 = vpop.permute.xlu0 %222
    %v225 = vlaneseq
    %v226 = vshrl.u32 %v225, 7
    %v227 = vsub.s32 2, %v226
    %v228 = vrot.slane %v165, %v227
    %v229 = vlaneseq
    %v230 = vshrl.u32 %v229, 7
    %v231 = vsub.s32 2, %v230
    %v232 = vrot.slane %v166, %v231
    %v233 = vlaneseq
    %v234 = vshrl.u32 %v233, 7
    %v235 = vsub.s32 2, %v234
    %v236 = vrot.slane %v167, %v235
    %v237 = vlaneseq
    %v238 = vshrl.u32 %v237, 7
    %v239 = vsub.s32 2, %v238
    %v240 = vrot.slane %v168, %v239
    %v241 = vmul.f32 %v223, %v228
    %v242 = vmul.f32 %v223, %v232
    %v243 = vmul.f32 %v223, %v236
    %v244 = vmul.f32 %v223, %v240
    %v245 = vadd.f32 %v217, %v241
    %v246 = vadd.f32 %v218, %v242
    %v247 = vadd.f32 %v219, %v243
    %v248 = vadd.f32 %v220, %v244
    %249 = vset.pattern.permute.xlu0 7
    %250 = vperm.xlu0 %249, %v38
    %v251 = vpop.permute.xlu0 %250
    %v253 = vlaneseq
    %v254 = vshrl.u32 %v253, 7
    %v255 = vsub.s32 3, %v254
    %v256 = vrot.slane %v165, %v255
    %v257 = vlaneseq
    %v258 = vshrl.u32 %v257, 7
    %v259 = vsub.s32 3, %v258
    %v260 = vrot.slane %v166, %v259
    %v261 = vlaneseq
    %v262 = vshrl.u32 %v261, 7
    %v263 = vsub.s32 3, %v262
    %v264 = vrot.slane %v167, %v263
    %v265 = vlaneseq
    %v266 = vshrl.u32 %v265, 7
    %v267 = vsub.s32 3, %v266
    %v268 = vrot.slane %v168, %v267
    %v269 = vmul.f32 %v251, %v256
    %v270 = vmul.f32 %v251, %v260
    %v271 = vmul.f32 %v251, %v264
    %v272 = vmul.f32 %v251, %v268
    %v273 = vadd.f32 %v245, %v269
    %v274 = vadd.f32 %v246, %v270
    %v275 = vadd.f32 %v247, %v271
    %v276 = vadd.f32 %v248, %v272
    %277 = vset.pattern.permute.xlu0 17
    %278 = vperm.xlu0 %277, %v38
    %v279 = vpop.permute.xlu0 %278
    %v281 = vadd.f32 %v273, %v279
    %v282 = vadd.f32 %v274, %v279
    %v283 = vadd.f32 %v275, %v279
    %v284 = vadd.f32 %v276, %v279
    %vm285 = vcmask 1043456
    %v286 = vsel %vm285, %v281, 0.0
    %v287 = vsel %vm285, %v282, 0.0
    %v288 = vadd.f32 %v286, %v287
    %289 = vadd.xlane.f32.xlu0 %v288
    %v290 = vpop.xlane.xlu0 %289
    %v291 = vrcp.pop 256.0
    %v292 = vmul.f32 %v290, %v291
    %v293 = vlaneseq
    %v294 = vshrl.u32 %v293, 7
    %v295 = vsub.s32 0, %v294
    %v296 = vrot.slane %v292, %v295
    %v297 = vmul.f32 %v38, %v296
    %v298 = vlaneseq
    %v299 = vshrl.u32 %v298, 7
    %v300 = vsub.s32 1, %v299
    %v301 = vrot.slane %v292, %v300
    %v302 = vmul.f32 %v38, %v301
    %304 = vrot.lane.b32.xlu0 %v302, 127
    %v305 = vpop.permute.xlu0 %304
    %v307 = vadd.f32 %v297, %v305
    %v308 = vlaneseq
    %v309 = vshrl.u32 %v308, 7
    %v310 = vsub.s32 2, %v309
    %v311 = vrot.slane %v292, %v310
    %v312 = vmul.f32 %v38, %v311
    %314 = vrot.lane.b32.xlu0 %v312, 126
    %v315 = vpop.permute.xlu0 %314
    %v317 = vadd.f32 %v307, %v315
    %v318 = vlaneseq
    %v319 = vshrl.u32 %v318, 7
    %v320 = vsub.s32 3, %v319
    %v321 = vrot.slane %v292, %v320
    %v322 = vmul.f32 %v38, %v321
    %324 = vrot.lane.b32.xlu0 %v322, 125
    %v325 = vpop.permute.xlu0 %324
    %v327 = vadd.f32 %v317, %v325
    %328 = vrot.lane.b32.xlu0 %v38, 118
    %v329 = vpop.permute.xlu0 %328
    %v331 = vadd.f32 %v327, %v329
    %v332 = vmax.f32 %v331, 0.0
    %v333 = vlaneseq
    %v334 = vshrl.u32 %v333, 7
    %v335 = vsub.s32 0, %v334
    %v336 = vrot.slane %v332, %v335
    %338 = vrot.lane.b32.xlu0 %v336, 4
    %v339 = vpop.permute.xlu0 %338
    %v341 = vmul.f32 %v38, %v339
    %v342 = vlaneseq
    %v343 = vshrl.u32 %v342, 7
    %v344 = vsub.s32 1, %v343
    %v345 = vrot.slane %v332, %v344
    %347 = vrot.lane.b32.xlu0 %v345, 5
    %v348 = vpop.permute.xlu0 %347
    %v350 = vmul.f32 %v38, %v348
    %352 = vrot.lane.b32.xlu0 %v350, 127
    %v353 = vpop.permute.xlu0 %352
    %v355 = vadd.f32 %v341, %v353
    %v356 = vlaneseq
    %v357 = vshrl.u32 %v356, 7
    %v358 = vsub.s32 2, %v357
    %v359 = vrot.slane %v332, %v358
    %361 = vrot.lane.b32.xlu0 %v359, 6
    %v362 = vpop.permute.xlu0 %361
    %v364 = vmul.f32 %v38, %v362
    %366 = vrot.lane.b32.xlu0 %v364, 126
    %v367 = vpop.permute.xlu0 %366
    %v369 = vadd.f32 %v355, %v367
    %v370 = vlaneseq
    %v371 = vshrl.u32 %v370, 7
    %v372 = vsub.s32 3, %v371
    %v373 = vrot.slane %v332, %v372
    %375 = vrot.lane.b32.xlu0 %v373, 7
    %v376 = vpop.permute.xlu0 %375
    %v378 = vmul.f32 %v38, %v376
    %380 = vrot.lane.b32.xlu0 %v378, 125
    %v381 = vpop.permute.xlu0 %380
    %v383 = vadd.f32 %v369, %v381
    %384 = vrot.lane.b32.xlu0 %v38, 121
    %v385 = vpop.permute.xlu0 %384
    %v387 = vadd.f32 %v383, %v385
    %v388 = vxor.u32 %v387, 2147483648
    %v389 = vmul.f32 %v388, 1.442695
    %v390 = vpow.pop %v389
    %v391 = vadd.f32 %v390, 1.0
    %v392 = vrcp.pop %v391
    %v393 = vmul.f32 1.0, %v392
    %395 = vset.pattern.permute.xlu0 12
    %396 = vperm.xlu0 %395, %v393
    %v397 = vpop.permute.xlu0 %396
    %v399 = vmul.f32 %v281, %v397
    %v400 = vmul.f32 %v282, %v397
    %v401 = vadd.f32 %v399, %v39
    %v402 = vadd.f32 %v400, %v43
    %v403 = vmax.f32 %v401, 0.0
    %v404 = vmax.f32 %v402, 0.0
    %v407 = vcombine.low %v403, %v404
    %409 = vst [vmem:[#allocation7] sm:$0xff] %v407
    %v410 = vsel %vm285, %v283, 0.0
    %v411 = vsel %vm285, %v284, 0.0
    %v412 = vadd.f32 %v410, %v411
    %413 = vadd.xlane.f32.xlu0 %v412
    %v414 = vpop.xlane.xlu0 %413
    %v415 = vmul.f32 %v414, %v291
    %v416 = vlaneseq
    %v417 = vshrl.u32 %v416, 7
    %v418 = vsub.s32 0, %v417
    %v419 = vrot.slane %v415, %v418
    %v420 = vmul.f32 %v38, %v419
    %v421 = vlaneseq
    %v422 = vshrl.u32 %v421, 7
    %v423 = vsub.s32 1, %v422
    %v424 = vrot.slane %v415, %v423
    %v425 = vmul.f32 %v38, %v424
    %427 = vrot.lane.b32.xlu0 %v425, 127
    %v428 = vpop.permute.xlu0 %427
    %v430 = vadd.f32 %v420, %v428
    %v431 = vlaneseq
    %v432 = vshrl.u32 %v431, 7
    %v433 = vsub.s32 2, %v432
    %v434 = vrot.slane %v415, %v433
    %v435 = vmul.f32 %v38, %v434
    %437 = vrot.lane.b32.xlu0 %v435, 126
    %v438 = vpop.permute.xlu0 %437
    %v440 = vadd.f32 %v430, %v438
    %v441 = vlaneseq
    %v442 = vshrl.u32 %v441, 7
    %v443 = vsub.s32 3, %v442
    %v444 = vrot.slane %v415, %v443
    %v445 = vmul.f32 %v38, %v444
    %447 = vrot.lane.b32.xlu0 %v445, 125
    %v448 = vpop.permute.xlu0 %447
    %v450 = vadd.f32 %v440, %v448
    %v451 = vadd.f32 %v450, %v329
    %v452 = vmax.f32 %v451, 0.0
    %v453 = vlaneseq
    %v454 = vshrl.u32 %v453, 7
    %v455 = vsub.s32 0, %v454
    %v456 = vrot.slane %v452, %v455
    %458 = vrot.lane.b32.xlu0 %v456, 4
    %v459 = vpop.permute.xlu0 %458
    %v461 = vmul.f32 %v38, %v459
    %v462 = vlaneseq
    %v463 = vshrl.u32 %v462, 7
    %v464 = vsub.s32 1, %v463
    %v465 = vrot.slane %v452, %v464
    %467 = vrot.lane.b32.xlu0 %v465, 5
    %v468 = vpop.permute.xlu0 %467
    %v470 = vmul.f32 %v38, %v468
    %472 = vrot.lane.b32.xlu0 %v470, 127
    %v473 = vpop.permute.xlu0 %472
    %v475 = vadd.f32 %v461, %v473
    %v476 = vlaneseq
    %v477 = vshrl.u32 %v476, 7
    %v478 = vsub.s32 2, %v477
    %v479 = vrot.slane %v452, %v478
    %481 = vrot.lane.b32.xlu0 %v479, 6
    %v482 = vpop.permute.xlu0 %481
    %v484 = vmul.f32 %v38, %v482
    %486 = vrot.lane.b32.xlu0 %v484, 126
    %v487 = vpop.permute.xlu0 %486
    %v489 = vadd.f32 %v475, %v487
    %v490 = vlaneseq
    %v491 = vshrl.u32 %v490, 7
    %v492 = vsub.s32 3, %v491
    %v493 = vrot.slane %v452, %v492
    %495 = vrot.lane.b32.xlu0 %v493, 7
    %v496 = vpop.permute.xlu0 %495
    %v498 = vmul.f32 %v38, %v496
    %500 = vrot.lane.b32.xlu0 %v498, 125
    %v501 = vpop.permute.xlu0 %500
    %v503 = vadd.f32 %v489, %v501
    %v504 = vadd.f32 %v503, %v385
    %v505 = vxor.u32 %v504, 2147483648
    %v506 = vmul.f32 %v505, 1.442695
    %v507 = vpow.pop %v506
    %v508 = vadd.f32 %v507, 1.0
    %v509 = vrcp.pop %v508
    %v510 = vmul.f32 1.0, %v509
    %512 = vset.pattern.permute.xlu0 12
    %513 = vperm.xlu0 %512, %v510
    %v514 = vpop.permute.xlu0 %513
    %v516 = vmul.f32 %v283, %v514
    %v517 = vmul.f32 %v284, %v514
    %v518 = vld [vmem:[%s40] sm:$0xff]
    %v520 = vcombine.high %v518, %v518
    %v522 = vadd.f32 %v516, %v518
    %v523 = vadd.f32 %v517, %v520
    %v524 = vmax.f32 %v522, 0.0
    %v525 = vmax.f32 %v523, 0.0
    %v528 = vcombine.low %v524, %v525
    %s530 = scalar_lea.vmem [#allocation7], 8
    %531 = vst [vmem:[%s530] sm:$0xff] %v528
    // Predicated region
    $region18: #{tpu_custom_call.1} parent=1 // pred_check
      _
    $region19: #{tpu_custom_call.1} parent=1 // pred_check_branch
      %533 = sbr.rel (0) target = $region21
    $region20: #{tpu_custom_call.1} parent=1 // pred_region
      %s535 = ssub.s32 256, 256
      %536 = vsyncadd [#allocation4], %s535
      %s537 = sshll.u32 [#allocation7], 4
      %s538 = int_to_ptr.vmem [resolvable:$true] %s537
      %543 = dma.vmem_to_hbm [thread:$0]  %s538, 256, %s2, [#allocation4], 128, 128, 8
    $region21: #{tpu_custom_call.1} parent=1 // pred_fallthru
      _
    // Predicated region
    $region22: #{tpu_custom_call.1} parent=1 // pred_check
      _
    $region23: #{tpu_custom_call.1} parent=1 // pred_check_branch
      %545 = sbr.rel (0) target = $region25
    $region24: #{tpu_custom_call.1} parent=1 // pred_region
      %546 = dma.done [#allocation4], 256
    $region25: #{tpu_custom_call.1} parent=1 // pred_fallthru
      _
    %547 = vsyncpa [#allocation3], 1
    %548 = vsyncpa [#allocation6], 1
    %549 = vsyncpa [#allocation4], 1

</llo_original>
